<compile_context>
chip_gen: v7x
topology: tpu7x:2x2x1
jax: 0.10.0
libtpu: 0.0.40
codegen_flags: <defaults>
</compile_context>

<pallas_src>
import numpy as np
import jax
import jax.numpy as jnp
from jax.experimental import pallas as pl
from jax.experimental.pallas import tpu as pltpu


# ----------------------------- interpolation weights -----------------------------

def _cv2_linear_axis(in_size: int, out_size: int):
    """Per-output source indices / fractions for OpenCV INTER_LINEAR.
    src = (dst + 0.5) * in/out - 0.5, clamped to [0, in-1]; frac zeroed at borders."""
    scale = in_size / out_size
    dst = np.arange(out_size, dtype=np.float64)
    src = np.clip((dst + 0.5) * scale - 0.5, 0.0, in_size - 1)
    i0 = np.floor(src).astype(np.int64)
    i1 = np.minimum(i0 + 1, in_size - 1)
    frac = (src - i0).astype(np.float32)
    return i0, i1, frac


def _cv2_linear_weight_matrix(in_size: int, out_size: int) -> np.ndarray:
    """Dense (out_size, in_size) interpolation matrix (2 nonzeros per row)."""
    i0, i1, frac = _cv2_linear_axis(in_size, out_size)
    w = np.zeros((out_size, in_size), np.float32)
    rows = np.arange(out_size)
    np.add.at(w, (rows, i0), 1.0 - frac)
    np.add.at(w, (rows, i1), frac)
    return w


# ----------------------------- tiling heuristics -----------------------------

def _pick_out_tile(h_out: int) -> int:
    for t in (256, 128, 64, 32, 16, 8):
        if h_out % t == 0:
            return t
    return h_out


def _pick_in_block(h_in: int) -> int:
    for b in (64, 32, 16, 8):
        if h_in % b == 0 and h_in // b >= 2:
            return b
    return h_in


# ----------------------------- kernel -----------------------------

def _make_kernel(rows_first: bool):
    """Grid = (row_tile i, window block k).  Accumulates over k into VMEM scratch."""

    def kernel(starts_ref, a_ref, x_ref, bt_ref, o_ref, acc_ref):
        k = pl.program_id(1)

        @pl.when(k == 0)
        def _init():
            acc_ref[...] = jnp.zeros_like(acc_ref)

        a_blk = a_ref[0, 0]            # (tm, BH)       windowed row weights
        x_blk = x_ref[...]             # (BH, W_in*C)   folded HWC image rows

        if rows_first:
            # Accumulate the row pass; apply column weights once per tile at the end.
            acc_ref[...] += jnp.dot(a_blk, x_blk, preferred_element_type=jnp.float32)
        else:
            # Apply (folded) column weights per input block; accumulate the output tile.
            mid = jnp.dot(x_blk, bt_ref[...], preferred_element_type=jnp.float32)
            acc_ref[...] += jnp.dot(a_blk, mid, preferred_element_type=jnp.float32)

        @pl.when(k == pl.num_programs(1) - 1)
        def _finish():
            if rows_first:
                o_ref[...] = jnp.dot(acc_ref[...], bt_ref[...],
                                     preferred_element_type=jnp.float32)
            else:
                o_ref[...] = acc_ref[...]

    return kernel


# ----------------------------- wrapper -----------------------------

def cv2_resize_pallas(img_hwc, resize_shape):
    """img_hwc: (H_in, W_in, C) float32 (HWC, as cv2 receives it).
    resize_shape: (W_out, H_out) -- cv2 convention.  Returns (H_out, W_out, C) f32."""
    w_out, h_out = int(resize_shape[0]), int(resize_shape[1])
    h_in, w_in, c = img_hwc.shape
    wc_in, wc_out = w_in * c, w_out * c

    # --- static interpolation weights ---
    a_full = _cv2_linear_weight_matrix(h_in, h_out)              # (H_out, H_in)
    b_full = _cv2_linear_weight_matrix(w_in, w_out)              # (W_out, W_in)
    # Channel-folded column weights so the column pass stays in native HWC layout.
    bt_fold = np.kron(b_full.T, np.eye(c, dtype=np.float32))     # (W_in*C, W_out*C)

    # Lane-dense output: pad the folded output width to a multiple of 128 so tile
    # stores are full unmasked vst.  Zero columns are sliced off in the wrapper.
    wc_out_pad = -(-wc_out // 128) * 128
    if wc_out_pad != wc_out:
        bt_pad = np.zeros((wc_in, wc_out_pad), np.float32)
        bt_pad[:, :wc_out] = bt_fold
        bt_fold = bt_pad

    # --- row tiling: tm output rows/tile; input window = num_k blocks of BH rows ---
    tm = _pick_out_tile(h_out)
    bh = _pick_in_block(h_in)
    n_tiles = h_out // tm
    n_in_blocks = h_in // bh

    i0, i1, _ = _cv2_linear_axis(h_in, h_out)
    starts, needed_k = [], 1
    for t in range(n_tiles):
        rmin = int(i0[t * tm:(t + 1) * tm].min())
        rmax = int(i1[t * tm:(t + 1) * tm].max())
        sb = rmin // bh
        starts.append(sb)
        needed_k = max(needed_k, -(-(rmax + 1 - sb * bh) // bh))   # ceil div
    num_k = min(needed_k, n_in_blocks)
    max_start = n_in_blocks - num_k
    starts = np.minimum(np.asarray(starts, np.int32), max_start).astype(np.int32)
    win = num_k * bh

    # Per-tile windowed row weights, shaped (n_tiles, num_k, tm, BH) so every block
    # equals the full trailing dims (no (8,128) issues for small tiles).
    a_win = np.zeros((n_tiles, num_k, tm, bh), np.float32)
    for t in range(n_tiles):
        s = int(starts[t]) * bh
        a_win[t] = (a_full[t * tm:(t + 1) * tm, s:s + win]
                    .reshape(tm, num_k, bh).transpose(1, 0, 2))

    # Native HWC image, channels folded into lanes -- free reshape, no transpose.
    x_fold = jnp.asarray(img_hwc, dtype=jnp.float32).reshape(h_in, wc_in)

    # Contraction order by actual per-tile MXU cost (includes the channel-fold factor
    # and the lane-dense output padding).
    rows_first = tm * wc_in * (win + wc_out_pad) <= win * wc_out_pad * (wc_in + tm)
    acc_shape = (tm, wc_in) if rows_first else (tm, wc_out_pad)

    out_fold = pl.pallas_call(
        _make_kernel(rows_first),
        out_shape=jax.ShapeDtypeStruct((h_out, wc_out_pad), jnp.float32),
        grid_spec=pltpu.PrefetchScalarGridSpec(
            num_scalar_prefetch=1,                 # starts: window block index per tile
            grid=(n_tiles, num_k),
            in_specs=[
                pl.BlockSpec((1, 1, tm, bh), lambda i, k, st: (i, k, 0, 0)),
                # scalar-prefetched, data-dependent input row window
                # (optionally add pipeline_mode=pl.Buffered(3) if DMA shows exposed)
                pl.BlockSpec((bh, wc_in), lambda i, k, st: (st[i] + k, 0)),
                pl.BlockSpec((wc_in, wc_out_pad), lambda i, k, st: (0, 0)),
            ],
            out_specs=pl.BlockSpec((tm, wc_out_pad), lambda i, k, st: (i, 0)),
            scratch_shapes=[pltpu.VMEM(acc_shape, jnp.float32)],
        ),
        compiler_params=pltpu.CompilerParams(
            dimension_semantics=("parallel", "arbitrary"),
            vmem_limit_bytes=64 * 1024 * 1024,
        ),
    )(jnp.asarray(starts), jnp.asarray(a_win), x_fold, jnp.asarray(bt_fold))

    # Drop zero padding (cheap XLA slice) and reshape back to HWC (free).
    if wc_out_pad != wc_out:
        out_fold = out_fold[:, :wc_out]
    return out_fold.reshape(h_out, w_out, c)


# ----------------------------- demo / self-check -----------------------------

if __name__ == "__main__":
    key = jax.random.PRNGKey(0)
    h_in, w_in, c = 96, 64, 3
    img = jax.random.uniform(key, (h_in, w_in, c), dtype=jnp.float32) * 255.0

    resize_shape = (32, 40)          # cv2 convention: (width, height)
    w_out, h_out = resize_shape

    out = cv2_resize_pallas(img, resize_shape)
    out = jax.block_until_ready(out)
    assert out.shape == (h_out, w_out, c)

    # Reference: same bilinear weights applied with a pure-JAX einsum.
    a = jnp.asarray(_cv2_linear_weight_matrix(h_in, h_out))
    b = jnp.asarray(_cv2_linear_weight_matrix(w_in, w_out))
    ref = jnp.einsum("qh,hwc,pw->qpc", a, img, b)
    err = float(jnp.max(jnp.abs(out - ref)))
    assert err < 2e-3, f"max abs err {err}"

    print("KERNEL_OK")
</pallas_src>

<mosaic_0001>
module attributes {stable_mosaic.version = 11 : i64} {
  func.func @kernel(%arg0: i32, %arg1: i32, %arg2: memref<5xi32, #tpu.memory_space<smem>>, %arg3: memref<1x1x8x32xf32, #tpu.memory_space<vmem>>, %arg4: memref<32x192xf32, #tpu.memory_space<vmem>>, %arg5: memref<192x128xf32, #tpu.memory_space<vmem>>, %arg6: memref<8x128xf32, #tpu.memory_space<vmem>>, %arg7: memref<8x192xf32, #tpu.memory_space<vmem>>) attributes {dimension_semantics = [#tpu.dimension_semantics<parallel>, #tpu.dimension_semantics<arbitrary>], iteration_bounds = array<i64: 5, 2>, scalar_prefetch = 1 : i64, scratch_operands = 1 : i64, tpu.core_type = #tpu.core_type<tc>, window_params = [{transform_indices = @transform_0, window_bounds = array<i64: 1, 1, 8, 32>}, {transform_indices = @transform_1, window_bounds = array<i64: 32, 192>}, {pipeline_mode = #tpu.pipeline_mode<synchronous>, transform_indices = @transform_2, window_bounds = array<i64: 192, 128>}, {transform_indices = @transform_3, window_bounds = array<i64: 8, 128>}]} {
    %c0_i32 = arith.constant 0 : i32
    %0 = arith.cmpi eq, %arg1, %c0_i32 : i32
    %1 = arith.extui %0 : i1 to i32
    %c0_i32_0 = arith.constant 0 : i32
    %2 = arith.cmpi ne, %1, %c0_i32_0 : i32
    scf.if %2 {
      %cst_11 = arith.constant 0.000000e+00 : f32
      %13 = vector.broadcast %cst_11 : f32 to vector<8x192xf32>
      %c0_12 = arith.constant 0 : index
      %c0_13 = arith.constant 0 : index
      %14 = vector.load %arg7[%c0_12, %c0_13] : memref<8x192xf32, #tpu.memory_space<vmem>>, vector<8x192xf32>
      tpu.vector_store %arg7[%c0_12, %c0_13], %13 {strides = array<i32>} : memref<8x192xf32, #tpu.memory_space<vmem>>, vector<8x192xf32>,
    } else {
    }
    %c0 = arith.constant 0 : index
    %c0_1 = arith.constant 0 : index
    %c0_2 = arith.constant 0 : index
    %c0_3 = arith.constant 0 : index
    %3 = vector.load %arg3[%c0, %c0_1, %c0_2, %c0_3] : memref<1x1x8x32xf32, #tpu.memory_space<vmem>>, vector<1x1x8x32xf32>
    %4 = vector.shape_cast %3 : vector<1x1x8x32xf32> to vector<8x32xf32>
    %c0_4 = arith.constant 0 : index
    %c0_5 = arith.constant 0 : index
    %5 = vector.load %arg4[%c0_4, %c0_5] : memref<32x192xf32, #tpu.memory_space<vmem>>, vector<32x192xf32>
    %c0_6 = arith.constant 0 : index
    %c0_7 = arith.constant 0 : index
    %6 = vector.load %arg7[%c0_6, %c0_7] : memref<8x192xf32, #tpu.memory_space<vmem>>, vector<8x192xf32>
    %cst = arith.constant dense<0.000000e+00> : vector<8x192xf32>
    %7 = tpu.matmul %4, %5, %cst {dimension_numbers = #tpu.dot_dimension_numbers<[1], [0], [0], [1], [0, 0, 1, 1], [], []>} : vector<8x32xf32>, vector<32x192xf32>, vector<8x192xf32> -> vector<8x192xf32>
    %8 = arith.addf %6, %7 : vector<8x192xf32>
    %c0_8 = arith.constant 0 : index
    %c0_9 = arith.constant 0 : index
    %9 = vector.load %arg7[%c0_8, %c0_9] : memref<8x192xf32, #tpu.memory_space<vmem>>, vector<8x192xf32>
    tpu.vector_store %arg7[%c0_8, %c0_9], %8 {strides = array<i32>} : memref<8x192xf32, #tpu.memory_space<vmem>>, vector<8x192xf32>,
    %c1_i32 = arith.constant 1 : i32
    %10 = arith.cmpi eq, %arg1, %c1_i32 : i32
    %11 = arith.extui %10 : i1 to i32
    %c0_i32_10 = arith.constant 0 : i32
    %12 = arith.cmpi ne, %11, %c0_i32_10 : i32
    scf.if %12 {
      %c0_11 = arith.constant 0 : index
      %c0_12 = arith.constant 0 : index
      %13 = vector.load %arg7[%c0_11, %c0_12] : memref<8x192xf32, #tpu.memory_space<vmem>>, vector<8x192xf32>
      %c0_13 = arith.constant 0 : index
      %c0_14 = arith.constant 0 : index
      %14 = vector.load %arg5[%c0_13, %c0_14] : memref<192x128xf32, #tpu.memory_space<vmem>>, vector<192x128xf32>
      %cst_15 = arith.constant dense<0.000000e+00> : vector<8x128xf32>
      %15 = tpu.matmul %13, %14, %cst_15 {dimension_numbers = #tpu.dot_dimension_numbers<[1], [0], [0], [1], [0, 0, 1, 1], [], []>} : vector<8x192xf32>, vector<192x128xf32>, vector<8x128xf32> -> vector<8x128xf32>
      %c0_16 = arith.constant 0 : index
      %c0_17 = arith.constant 0 : index
      %16 = vector.load %arg6[%c0_16, %c0_17] : memref<8x128xf32, #tpu.memory_space<vmem>>, vector<8x128xf32>
      tpu.vector_store %arg6[%c0_16, %c0_17], %15 {strides = array<i32>} : memref<8x128xf32, #tpu.memory_space<vmem>>, vector<8x128xf32>,
    } else {
    }
    return
  }
  func.func @transform_0(%arg0: i32, %arg1: i32, %arg2: memref<5xi32, #tpu.memory_space<smem>>) -> (i32, i32, i32, i32) {
    %c0_i32 = arith.constant 0 : i32
    %c0_i32_0 = arith.constant 0 : i32
    %c0_i32_1 = arith.constant 0 : i32
    return %arg0, %arg1, %c0_i32, %c0_i32_0 : i32, i32, i32, i32
  }
  func.func @transform_1(%arg0: i32, %arg1: i32, %arg2: memref<5xi32, #tpu.memory_space<smem>>) -> (i32, i32) {
    %0 = arith.index_cast %arg0 : i32 to index
    %1 = memref.load %arg2[%0] : memref<5xi32, #tpu.memory_space<smem>>
    %2 = arith.addi %1, %arg1 : i32
    %c0_i32 = arith.constant 0 : i32
    %c0_i32_0 = arith.constant 0 : i32
    return %2, %c0_i32 : i32, i32
  }
  func.func @transform_2(%arg0: i32, %arg1: i32, %arg2: memref<5xi32, #tpu.memory_space<smem>>) -> (i32, i32) {
    %c0_i32 = arith.constant 0 : i32
    %c0_i32_0 = arith.constant 0 : i32
    %c0_i32_1 = arith.constant 0 : i32
    return %c0_i32, %c0_i32_0 : i32, i32
  }
  func.func @transform_3(%arg0: i32, %arg1: i32, %arg2: memref<5xi32, #tpu.memory_space<smem>>) -> (i32, i32) {
    %c0_i32 = arith.constant 0 : i32
    %c0_i32_0 = arith.constant 0 : i32
    return %arg0, %c0_i32 : i32, i32
  }
}

</mosaic_0001>

<llo_original>
// kernel: tpu_custom_call.1
$region0: #{tpu_custom_call.1}
  #allocation0 [shape = 'u32[]', space=smem, size = 0x4, offset = 0x4, fixed_abs, tag = 'smem constant byte address 0x4 - core index']
  #allocation1 [shape = 'u32[144,128]{1,0:T(1,128)}', space=vmem, size = 0x12000, scoped, tag = 'internal scratch']
  #allocation2 [shape = 'f32[8,192]{1,0:T(8,128)}', space=vmem, size = 0x2000, scoped, tag = 'scratch operand']
  #allocation3 [shape = 's32[1]{0}', space=sflag, size = 0x4, scoped, tag = 'scoped memory for tpu_custom_call.1']
  #allocation4 [shape = 'u8[512]{0}', space=smem, size = 0x200, scoped, tag = 'prefetched SMEM operand 0']
  %s0 = inlined_call_operand.hbm [shape: s32[5], index: 0, kind: input, shape index: {}]
  %s1 = inlined_call_operand.hbm [shape: f32[5,2,8,32], index: 1, kind: input, shape index: {}]
  %s2 = inlined_call_operand.hbm [shape: f32[96,192], index: 2, kind: input, shape index: {}]
  %s3 = inlined_call_operand.hbm [shape: f32[192,128], index: 3, kind: input, shape index: {}]
  %s4 = inlined_call_operand.hbm [shape: f32[40,128], index: 4, kind: output, shape index: {}]
  %s5 = sld [smem:[#allocation0]]
  $region65: #{tpu_custom_call.1} parent=0
    _
  %s7 = ssub.s32 1, %s5
  %s8 = scalar_select 0, %s7, %s5
  %10 = dma.hbm_to_smem %s0, 16, [#allocation4], [#allocation3]
  %11 = dma.done [#allocation3], 16
  %12 = sfence
  $region1: #{tpu_custom_call.1} parent=0
    #allocation5 [shape = 'u8[8192]{0}', space=vmem, size = 0x2000, scoped, tag = 'input window, operand 1']
    #allocation6 [shape = 's32[2]{0}', space=sflag, size = 0x8, scoped, tag = 'scoped memory for tpu_custom_call.1']
    #allocation7 [shape = 's32[2]{0}', space=sflag, size = 0x8, scoped, tag = 'scoped memory for tpu_custom_call.1']
    #allocation8 [shape = 'u8[65536]{0}', space=vmem, size = 0x10000, scoped, tag = 'input window, operand 2']
    #allocation9 [shape = 's32[2]{0}', space=sflag, size = 0x8, scoped, tag = 'scoped memory for tpu_custom_call.1']
    #allocation10 [shape = 'u8[98304]{0}', space=vmem, size = 0x18000, scoped, tag = 'input window, operand 3, single buffered']
    #allocation11 [shape = 'u8[8192]{0}', space=vmem, size = 0x2000, scoped, tag = 'output window, operand 0']
    %13 = vsyncpa [#allocation6], 0
    %s14 = scalar_lea.sflag [#allocation6], 1
    %15 = vsyncpa %s14, 0
    %16 = vsyncpa [#allocation9], 0
    %s17 = scalar_lea.sflag [#allocation9], 1
    %18 = vsyncpa %s17, 0
    %19 = vsyncpa [#allocation7], 0
    %s20 = scalar_lea.sflag [#allocation7], 1
    %21 = vsyncpa %s20, 0
    loop: start=0, step=1, limit=12
    $region2: #{tpu_custom_call.1} parent=1 // loop_pre_header
      _
    $region3: #{tpu_custom_call.1} parent=1 // loop_header
      %s23 = sphi 0, %s27
      %p24 = scmp.ge.s32.totalorder %s23, 12
      %s30 = sphi 0, %s42
      %s31 = sphi 0, %s38
      %s32 = sphi 0, %s30
      %s33 = sphi 0, %s31
      %s34 = sphi 0, %s32
      %s35 = sphi 0, %s33
      %s47 = sphi 0, %s49
      %s50 = sphi 0, %s47
      %s51 = sphi 0, %s50
      %s67 = sphi 0, %s51
      %s77 = sphi 0, %s79
      %s80 = sphi 0, %s77
      %s81 = sphi 0, %s80
      %s97 = sphi 0, %s81
      %s101 = sphi 0, %s101
      %s103 = sphi 0, %s101
      %s104 = sphi 0, %s103
      %s118 = sphi 0, %s104
      %s124 = sphi 0, %s126
      %s127 = sphi 0, %s124
      %s128 = sphi 0, %s127
      %s144 = sphi 0, %s128
    $region4: #{tpu_custom_call.1} parent=1 // loop_header_branch
      %26 = sbr.rel (%p24) target = $region8
    $region5: #{tpu_custom_call.1} parent=1 // loop_body
      %s28 = ssub.s32 %s23, 1
      %s29 = ssub.s32 %s23, 2
      %s36 = sadd.s32 1, %s31
      %p37 = scmp.ge.s32.totalorder %s36, 2
      %s38 = scalar_select %p37, 0, %s36
      %s39 = sadd.s32 1, %s30
      %s40 = scalar_select %p37, %s39, %s30
      %p41 = scmp.ge.s32.totalorder %s40, 5
      %s42 = scalar_select %p41, 0, %s40
      %s43 = ssub.s32 %s30, %s42
      %s44 = ssub.s32 %s31, %s38
      %s45 = sor.u32 %s43, %s44
      %p46 = scmp.eq.s32.totalorder %s45, 0
      %s48 = sadd.s32 %s47, 1
      %s49 = scalar_select %p46, %s47, %s48
      %p52 = pneg %p46
      %p53 = scmp.eq.s32.totalorder %s23, 9
      %p54 = por %p52, %p53
      %p55 = scmp.ne.s32.totalorder %s47, %s50
      %p56 = scmp.eq.s32.totalorder %s23, 0
      %p57 = por %p55, %p56
      %p58 = scmp.ne.s32.totalorder %s47, %s50
      %p59 = scmp.eq.s32.totalorder %s28, 9
      %p60 = por %p58, %p59
      %p61 = scmp.ne.s32.totalorder %s50, %s51
      %p62 = scmp.eq.s32.totalorder %s28, 0
      %p63 = por %p61, %p62
      %p64 = scmp.ne.s32.totalorder %s50, %s51
      %p65 = scmp.eq.s32.totalorder %s29, 9
      %p66 = por %p64, %p65
      %p68 = scmp.ne.s32.totalorder %s51, %s67
      %p69 = scmp.eq.s32.totalorder %s29, 0
      %p70 = por %p68, %p69
      %s71 = sld [smem:[#allocation4 + %s30]]
      %s72 = sadd.s32 %s71, %s31
      %s73 = sld [smem:[#allocation4 + %s42]]
      %s74 = sadd.s32 %s73, %s38
      %s75 = ssub.s32 %s72, %s74
      %p76 = scmp.eq.s32.totalorder %s75, 0
      %s78 = sadd.s32 %s77, 1
      %s79 = scalar_select %p76, %s77, %s78
      %p82 = pneg %p76
      %p83 = scmp.eq.s32.totalorder %s23, 9
      %p84 = por %p82, %p83
      %p85 = scmp.ne.s32.totalorder %s77, %s80
      %p86 = scmp.eq.s32.totalorder %s23, 0
      %p87 = por %p85, %p86
      %p88 = scmp.ne.s32.totalorder %s77, %s80
      %p89 = scmp.eq.s32.totalorder %s28, 9
      %p90 = por %p88, %p89
      %p91 = scmp.ne.s32.totalorder %s80, %s81
      %p92 = scmp.eq.s32.totalorder %s28, 0
      %p93 = por %p91, %p92
      %p94 = scmp.ne.s32.totalorder %s80, %s81
      %p95 = scmp.eq.s32.totalorder %s29, 9
      %p96 = por %p94, %p95
      %p98 = scmp.ne.s32.totalorder %s81, %s97
      %p99 = scmp.eq.s32.totalorder %s29, 0
      %p100 = por %p98, %p99
      %s102 = sadd.s32 %s101, 1
      %p105 = scmp.eq.s32.totalorder %s23, 9
      %p106 = scmp.ne.s32.totalorder %s101, %s103
      %p107 = scmp.eq.s32.totalorder %s23, 0
      %p108 = por %p106, %p107
      %p109 = scmp.ne.s32.totalorder %s101, %s103
      %p110 = scmp.eq.s32.totalorder %s28, 9
      %p111 = por %p109, %p110
      %p112 = scmp.ne.s32.totalorder %s103, %s104
      %p113 = scmp.eq.s32.totalorder %s28, 0
      %p114 = por %p112, %p113
      %p115 = scmp.ne.s32.totalorder %s103, %s104
      %p116 = scmp.eq.s32.totalorder %s29, 9
      %p117 = por %p115, %p116
      %p119 = scmp.ne.s32.totalorder %s104, %s118
      %p120 = scmp.eq.s32.totalorder %s29, 0
      %p121 = por %p119, %p120
      %s122 = ssub.s32 %s30, %s42
      %p123 = scmp.eq.s32.totalorder %s122, 0
      %s125 = sadd.s32 %s124, 1
      %s126 = scalar_select %p123, %s124, %s125
      %p129 = pneg %p123
      %p130 = scmp.eq.s32.totalorder %s23, 9
      %p131 = por %p129, %p130
      %p132 = scmp.ne.s32.totalorder %s124, %s127
      %p133 = scmp.eq.s32.totalorder %s23, 0
      %p134 = por %p132, %p133
      %p135 = scmp.ne.s32.totalorder %s124, %s127
      %p136 = scmp.eq.s32.totalorder %s28, 9
      %p137 = por %p135, %p136
      %p138 = scmp.ne.s32.totalorder %s127, %s128
      %p139 = scmp.eq.s32.totalorder %s28, 0
      %p140 = por %p138, %p139
      %p141 = scmp.ne.s32.totalorder %s127, %s128
      %p142 = scmp.eq.s32.totalorder %s29, 9
      %p143 = por %p141, %p142
      %p145 = scmp.ne.s32.totalorder %s128, %s144
      %p146 = scmp.eq.s32.totalorder %s29, 0
      %p147 = por %p145, %p146
      %p148 = scmp.le.s32.totalorder 1, %s23
      %p149 = scmp.lt.s32.totalorder %s23, 11
      %p150 = pnand %p148, %p149
      %p151 = pneg %p150
      // Predicated region
      $region9: #{tpu_custom_call.1} parent=5 // pred_check
        _
      $region10: #{tpu_custom_call.1} parent=5 // pred_check_branch
        %153 = sbr.rel (%p150) target = $region12
      $region11: #{tpu_custom_call.1} parent=5 // pred_region
        %s154 = ssub.s32 %s23, 1
        // Predicated region
        $region13: #{tpu_custom_call.1} parent=11 // pred_check
          %p155 = pneg %p114
        $region14: #{tpu_custom_call.1} parent=11 // pred_check_branch
          %157 = sbr.rel (%p155) target = $region16
        $region15: #{tpu_custom_call.1} parent=11 // pred_region
          %s159 = ssub.s32 3072, 3072
          %160 = vsyncadd [#allocation9], %s159
          %s161 = sshll.u32 [#allocation10], 4
          %s162 = int_to_ptr.vmem [resolvable:$true] %s161
          %167 = dma.hbm_to_vmem [thread:$0]  %s3, 3072, %s162, [#allocation9], 128, 128, 8
        $region16: #{tpu_custom_call.1} parent=11 // pred_fallthru
          _
      $region12: #{tpu_custom_call.1} parent=5 // pred_fallthru
        _
      %p168 = scmp.lt.s32.totalorder %s23, 10
      // Predicated region
      $region17: #{tpu_custom_call.1} parent=5 // pred_check
        %p169 = pneg %p168
      $region18: #{tpu_custom_call.1} parent=5 // pred_check_branch
        %171 = sbr.rel (%p169) target = $region20
      $region19: #{tpu_custom_call.1} parent=5 // pred_region
        // Predicated region
        $region21: #{tpu_custom_call.1} parent=19 // pred_check
          %p172 = pneg %p57
        $region22: #{tpu_custom_call.1} parent=19 // pred_check_branch
          %174 = sbr.rel (%p172) target = $region24
        $region23: #{tpu_custom_call.1} parent=19 // pred_region
          %s175 = sand.u32 %s47, 1
          %s176 = scalar_lea.sflag [#allocation6], %s175
          %s177 = sand.u32 %s47, 1
          %s178 = smul.addr %s177, 8
          %s179 = scalar_lea.vmem [#allocation5], %s178
          %s181 = ssub.s32 128, 128
          %182 = vsyncadd %s176, %s181
          %s183 = smul.addr %s30, 2
          %s184 = sadd.s32 %s31, %s183
          %s185 = smul.addr %s184, 128
          %s186 = scalar_lea.hbm %s1, %s185
          %s188 = sshll.u32 %s179, 4
          %s189 = int_to_ptr.vmem [resolvable:$true] %s188
          %191 = dma.hbm_to_vmem [thread:$0]  %s186, 128, %s189, %s176
        $region24: #{tpu_custom_call.1} parent=19 // pred_fallthru
          _
        // Predicated region
        $region25: #{tpu_custom_call.1} parent=19 // pred_check
          %p192 = pneg %p87
        $region26: #{tpu_custom_call.1} parent=19 // pred_check_branch
          %194 = sbr.rel (%p192) target = $region28
        $region27: #{tpu_custom_call.1} parent=19 // pred_region
          %s195 = sand.u32 %s23, 1
          %s196 = scalar_lea.sflag [#allocation9], %s195
          %s197 = sand.u32 %s77, 1
          %s198 = smul.addr %s197, 64
          %s199 = scalar_lea.vmem [#allocation8], %s198
          %s200 = sld [smem:[#allocation4 + %s30]]
          %s201 = sadd.s32 %s200, %s31
          %s202 = smul.u32 4, %s201
          %s204 = ssub.s32 1024, 1024
          %205 = vsyncadd %s196, %s204
          %s206 = smul.addr %s202, 2
          %s207 = smul.addr %s206, 128
          %s208 = scalar_lea.hbm %s2, %s207
          %s209 = sshll.u32 %s199, 4
          %s210 = int_to_ptr.vmem [resolvable:$true] %s209
          %215 = dma.hbm_to_vmem [thread:$0]  %s208, 1024, %s210, %s196, 256, 256, 16
        $region28: #{tpu_custom_call.1} parent=19 // pred_fallthru
          _
      $region20: #{tpu_custom_call.1} parent=5 // pred_fallthru
        _
      %p216 = scmp.le.s32.totalorder 1, %s23
      %p217 = scmp.lt.s32.totalorder %s23, 11
      %p218 = pnand %p216, %p217
      %p219 = pneg %p218
      // Predicated region
      $region29: #{tpu_custom_call.1} parent=5 // pred_check
        _
      $region30: #{tpu_custom_call.1} parent=5 // pred_check_branch
        %221 = sbr.rel (%p218) target = $region32
      $region31: #{tpu_custom_call.1} parent=5 // pred_region
        %s222 = ssub.s32 %s23, 1
        %s223 = sand.u32 %s50, 1
        %s224 = scalar_lea.sflag [#allocation6], %s223
        %s225 = sand.u32 %s50, 1
        %s226 = smul.addr %s225, 8
        %s227 = scalar_lea.vmem [#allocation5], %s226
        // Predicated region
        $region33: #{tpu_custom_call.1} parent=31 // pred_check
          %p228 = pneg %p63
        $region34: #{tpu_custom_call.1} parent=31 // pred_check_branch
          %230 = sbr.rel (%p228) target = $region36
        $region35: #{tpu_custom_call.1} parent=31 // pred_region
          %231 = dma.done %s224, 128
        $region36: #{tpu_custom_call.1} parent=31 // pred_fallthru
          _
        %s232 = sand.u32 %s28, 1
        %s233 = scalar_lea.sflag [#allocation9], %s232
        %s234 = sand.u32 %s80, 1
        %s235 = smul.addr %s234, 64
        %s236 = scalar_lea.vmem [#allocation8], %s235
        // Predicated region
        $region37: #{tpu_custom_call.1} parent=31 // pred_check
          %p237 = pneg %p93
        $region38: #{tpu_custom_call.1} parent=31 // pred_check_branch
          %239 = sbr.rel (%p237) target = $region40
        $region39: #{tpu_custom_call.1} parent=31 // pred_region
          %240 = dma.done %s233, 1024
        $region40: #{tpu_custom_call.1} parent=31 // pred_fallthru
          _
        // Predicated region
        $region41: #{tpu_custom_call.1} parent=31 // pred_check
          %p241 = pneg %p114
        $region42: #{tpu_custom_call.1} parent=31 // pred_check_branch
          %243 = sbr.rel (%p241) target = $region44
        $region43: #{tpu_custom_call.1} parent=31 // pred_region
          %244 = dma.done [#allocation9], 3072
        $region44: #{tpu_custom_call.1} parent=31 // pred_fallthru
          _
        %s245 = sand.u32 %s50, 1
        %s246 = scalar_lea.sflag [#allocation6], %s245
        %s247 = sand.u32 %s50, 1
        %s248 = smul.addr %s247, 8
        %s249 = scalar_lea.vmem [#allocation5], %s248
        %p250 = pneg %p63
        %p251 = pneg %p60
        %s252 = sand.u32 %s28, 1
        %s253 = scalar_lea.sflag [#allocation9], %s252
        %s254 = sand.u32 %s80, 1
        %s255 = smul.addr %s254, 64
        %s256 = scalar_lea.vmem [#allocation8], %s255
        %p257 = pneg %p93
        %p258 = pneg %p90
        %p259 = pneg %p114
        %p260 = pneg %p111
        %p261 = pneg %p140
        %p262 = pneg %p137
        %s263 = sand.u32 %s127, 1
        %s264 = scalar_lea.sflag [#allocation7], %s263
        %s265 = sand.u32 %s127, 1
        %s266 = smul.addr %s265, 8
        %s267 = scalar_lea.vmem [#allocation11], %s266
        %s268 = sld [smem:[#allocation4 + %s32]]
        %s269 = sadd.s32 %s268, %s33
        %s270 = smul.u32 4, %s269
        %p271 = scmp.eq.s32.totalorder %s33, 0
        // Predicated region
        $region45: #{tpu_custom_call.1} parent=31 // pred_check
          %p272 = pneg %p271
        $region46: #{tpu_custom_call.1} parent=31 // pred_check_branch
          %274 = sbr.rel (%p272) target = $region48
        $region47: #{tpu_custom_call.1} parent=31 // pred_region
          %275 = vst [vmem:[#allocation2] sm:$0xff] 0.0
          %vm276 = vcmask 523264
          %277 = vst.msk [vmem:[#allocation2 + $0x8] sm:$0xff] %vm276, 0.0
        $region48: #{tpu_custom_call.1} parent=31 // pred_fallthru
          _
        %v278 = vld [vmem:[%s227] sm:$0xff]
        %v279 = vld [vmem:[%s236] sm:$0xff]
        %v280 = vld [vmem:[%s236 + $0x8] sm:$0xff]
        %v281 = vld [vmem:[%s236 + $0x10] sm:$0xff]
        %v282 = vld [vmem:[%s236 + $0x18] sm:$0xff]
        %v283 = vld [vmem:[%s236 + $0x20] sm:$0xff]
        %v284 = vld [vmem:[%s236 + $0x28] sm:$0xff]
        %v285 = vld [vmem:[%s236 + $0x30] sm:$0xff]
        %v286 = vld [vmem:[%s236 + $0x38] sm:$0xff]
        %v287 = vld [vmem:[#allocation2] sm:$0xff]
        %v288 = vld [vmem:[#allocation2 + $0x8] sm:$0xff]
        %vm289 = vcmask 261120
        %v291 = vsel %vm289, %v278, 0
        %293 = vmatprep.subr.mxu0 %v280
        %294 = vmatpush1.msra.mxu0 %v279
        %295 = vmatprep.subr.mxu0 %v282
        %296 = vmatpush1.msra.mxu0 %v281
        %297 = vmatprep.subr.mxu0 %v284
        %298 = vmatpush1.msra.mxu0 %v283
        %299 = vmatprep.subr.mxu0 %v286
        %300 = vmatpush1.msra.mxu0 %v285
        %301 = vmatprep.subr.mxu0 0.0
        %302 = vmatpush1.msra.mxu0 0.0
        %303 = vmatprep.subr.mxu0 0.0
        %304 = vmatpush1.msra.mxu0 0.0
        %305 = vmatprep.subr.mxu0 0.0
        %306 = vmatpush1.msra.mxu0 0.0
        %307 = vmatprep.subr.mxu0 0.0
        %308 = vmatpush1.msra.mxu0 0.0
        %309 = vmatprep.subr.mxu0 0.0
        %310 = vmatpush1.msra.mxu0 0.0
        %311 = vmatprep.subr.mxu0 0.0
        %312 = vmatpush1.msra.mxu0 0.0
        %313 = vmatprep.subr.mxu0 0.0
        %314 = vmatpush1.msra.mxu0 0.0
        %315 = vmatprep.subr.mxu0 0.0
        %316 = vmatpush1.msra.mxu0 0.0
        %317 = vmatprep.subr.mxu0 0.0
        %318 = vmatpush1.msra.mxu0 0.0
        %319 = vmatprep.subr.mxu0 0.0
        %320 = vmatpush1.msra.mxu0 0.0
        %321 = vmatprep.subr.mxu0 0.0
        %322 = vmatpush1.msra.mxu0 0.0
        %323 = vmatprep.subr.mxu0 0.0
        %324 = vmatpush1.msra.mxu0 0.0
        %325 = vmatprep.subr.mxu0 0.0
        %326 = vmatpush1.msra.mxu0 0.0
        %327 = vmatprep.subr.mxu0 0.0
        %328 = vmatpush1.msra.mxu0 0.0
        %329 = vmatprep.subr.mxu0 0.0
        %330 = vmatpush1.msra.mxu0 0.0
        %331 = vmatprep.subr.mxu0 0.0
        %332 = vmatpush1.msra.mxu0 0.0
        %333 = vmatprep.subr.mxu0 0.0
        %334 = vmatpush1.msra.mxu0 0.0
        %335 = vmatprep.subr.mxu0 0.0
        %336 = vmatpush1.msra.mxu0 0.0
        %337 = vmatprep.subr.mxu0 0.0
        %338 = vmatpush1.msra.mxu0 0.0
        %339 = vmatprep.subr.mxu0 0.0
        %340 = vmatpush1.msra.mxu0 0.0
        %341 = vmatprep.subr.mxu0 0.0
        %342 = vmatpush1.msra.mxu0 0.0
        %343 = vmatprep.subr.mxu0 0.0
        %344 = vmatpush1.msra.mxu0 0.0
        %345 = vmatprep.subr.mxu0 0.0
        %346 = vmatpush1.msra.mxu0 0.0
        %347 = vmatprep.subr.mxu0 0.0
        %348 = vmatpush1.msra.mxu0 0.0
        %349 = vmatprep.subr.mxu0 0.0
        %350 = vmatpush1.msra.mxu0 0.0
        %351 = vmatprep.subr.mxu0 0.0
        %352 = vmatpush1.msra.mxu0 0.0
        %353 = vmatprep.subr.mxu0 0.0
        %354 = vmatpush1.msra.mxu0 0.0
        %355 = vmatprep.subr.mxu0 0.0
        %356 = vmatpush1.msra.mxu0 0.0
        %357 = vmatprep.mubr.f32.mxu0 0.0
        %358 = vmatmul.mubr.f32.gmra.mrb[0].mxu0 %v291
        %v359 = vpop.f32.mrb[0].mxu0
        %v360 = vadd.f32 0.0, %v359
        %v361 = vpop.f32.mrb[0].mxu0
        %v362 = vadd.f32 0.0, %v361
        %363 = vdwg.mxu0
        %v364 = vadd.f32 %v287, %v360
        %v365 = vadd.f32 %v288, %v362
        %366 = vst [vmem:[#allocation2] sm:$0xff] %v364
        %vm367 = vcmask 523264
        %368 = vst.msk [vmem:[#allocation2 + $0x8] sm:$0xff] %vm367, %v365
        %p369 = scmp.eq.s32.totalorder %s33, 1
        // Predicated region
        $region49: #{tpu_custom_call.1} parent=31 // pred_check
          %p370 = pneg %p369
        $region50: #{tpu_custom_call.1} parent=31 // pred_check_branch
          %372 = sbr.rel (%p370) target = $region52
        $region51: #{tpu_custom_call.1} parent=31 // pred_region
          %v373 = vld [vmem:[#allocation2] sm:$0xff]
          %v374 = vld [vmem:[#allocation2 + $0x8] sm:$0xff]
          %v375 = vld [vmem:[#allocation10] sm:$0xff]
          %v376 = vld [vmem:[#allocation10 + $0x8] sm:$0xff]
          %v377 = vld [vmem:[#allocation10 + $0x10] sm:$0xff]
          %v378 = vld [vmem:[#allocation10 + $0x18] sm:$0xff]
          %v379 = vld [vmem:[#allocation10 + $0x20] sm:$0xff]
          %v380 = vld [vmem:[#allocation10 + $0x28] sm:$0xff]
          %v381 = vld [vmem:[#allocation10 + $0x30] sm:$0xff]
          %v382 = vld [vmem:[#allocation10 + $0x38] sm:$0xff]
          %v383 = vld [vmem:[#allocation10 + $0x40] sm:$0xff]
          %v384 = vld [vmem:[#allocation10 + $0x48] sm:$0xff]
          %v385 = vld [vmem:[#allocation10 + $0x50] sm:$0xff]
          %v386 = vld [vmem:[#allocation10 + $0x58] sm:$0xff]
          %v387 = vld [vmem:[#allocation10 + $0x60] sm:$0xff]
          %v388 = vld [vmem:[#allocation10 + $0x68] sm:$0xff]
          %v389 = vld [vmem:[#allocation10 + $0x70] sm:$0xff]
          %v390 = vld [vmem:[#allocation10 + $0x78] sm:$0xff]
          %v391 = vld [vmem:[#allocation10 + $0x80] sm:$0xff]
          %v392 = vld [vmem:[#allocation10 + $0x88] sm:$0xff]
          %v393 = vld [vmem:[#allocation10 + $0x90] sm:$0xff]
          %v394 = vld [vmem:[#allocation10 + $0x98] sm:$0xff]
          %v395 = vld [vmem:[#allocation10 + $0xa0] sm:$0xff]
          %v396 = vld [vmem:[#allocation10 + $0xa8] sm:$0xff]
          %v397 = vld [vmem:[#allocation10 + $0xb0] sm:$0xff]
          %v398 = vld [vmem:[#allocation10 + $0xb8] sm:$0xff]
          %v400 = vsel %vm367, %v374, 0
          %402 = vmatprep.subr.mxu0 0.0
          %403 = vmatpush1.msra.mxu0 %v375
          %404 = vmatprep.subr.mxu0 0.0
          %405 = vmatpush1.msra.mxu0 %v376
          %406 = vmatprep.subr.mxu0 0.0
          %407 = vmatpush1.msra.mxu0 %v377
          %408 = vmatprep.subr.mxu0 0.0
          %409 = vmatpush1.msra.mxu0 %v378
          %410 = vmatprep.subr.mxu0 0.0
          %411 = vmatpush1.msra.mxu0 %v379
          %412 = vmatprep.subr.mxu0 0.0
          %413 = vmatpush1.msra.mxu0 %v380
          %414 = vmatprep.subr.mxu0 0.0
          %415 = vmatpush1.msra.mxu0 %v381
          %416 = vmatprep.subr.mxu0 0.0
          %417 = vmatpush1.msra.mxu0 %v382
          %418 = vmatprep.subr.mxu0 0.0
          %419 = vmatpush1.msra.mxu0 %v383
          %420 = vmatprep.subr.mxu0 0.0
          %421 = vmatpush1.msra.mxu0 %v384
          %422 = vmatprep.subr.mxu0 0.0
          %423 = vmatpush1.msra.mxu0 %v385
          %424 = vmatprep.subr.mxu0 0.0
          %425 = vmatpush1.msra.mxu0 %v386
          %426 = vmatprep.subr.mxu0 0.0
          %427 = vmatpush1.msra.mxu0 %v387
          %428 = vmatprep.subr.mxu0 0.0
          %429 = vmatpush1.msra.mxu0 %v388
          %430 = vmatprep.subr.mxu0 0.0
          %431 = vmatpush1.msra.mxu0 %v389
          %432 = vmatprep.subr.mxu0 0.0
          %433 = vmatpush1.msra.mxu0 %v390
          %434 = vmatprep.subr.mxu0 0.0
          %435 = vmatpush1.msra.mxu0 %v391
          %436 = vmatprep.subr.mxu0 0.0
          %437 = vmatpush1.msra.mxu0 %v392
          %438 = vmatprep.subr.mxu0 0.0
          %439 = vmatpush1.msra.mxu0 %v393
          %440 = vmatprep.subr.mxu0 0.0
          %441 = vmatpush1.msra.mxu0 %v394
          %442 = vmatprep.subr.mxu0 0.0
          %443 = vmatpush1.msra.mxu0 %v395
          %444 = vmatprep.subr.mxu0 0.0
          %445 = vmatpush1.msra.mxu0 %v396
          %446 = vmatprep.subr.mxu0 0.0
          %447 = vmatpush1.msra.mxu0 %v397
          %448 = vmatprep.subr.mxu0 0.0
          %449 = vmatpush1.msra.mxu0 %v398
          %450 = vmatprep.subr.mxu0 0.0
          %451 = vmatpush1.msra.mxu0 0.0
          %452 = vmatprep.subr.mxu0 0.0
          %453 = vmatpush1.msra.mxu0 0.0
          %454 = vmatprep.subr.mxu0 0.0
          %455 = vmatpush1.msra.mxu0 0.0
          %456 = vmatprep.subr.mxu0 0.0
          %457 = vmatpush1.msra.mxu0 0.0
          %458 = vmatprep.subr.mxu0 0.0
          %459 = vmatpush1.msra.mxu0 0.0
          %460 = vmatprep.subr.mxu0 0.0
          %461 = vmatpush1.msra.mxu0 0.0
          %462 = vmatprep.subr.mxu0 0.0
          %463 = vmatpush1.msra.mxu0 0.0
          %464 = vmatprep.subr.mxu0 0.0
          %465 = vmatpush1.msra.mxu0 0.0
          %466 = vmatprep.mubr.f32.mxu0 %v400
          %467 = vmatmul.mubr.f32.gmra.mrb[0].mxu0 %v373
          %v468 = vpop.f32.mrb[0].mxu0
          %v469 = vadd.f32 0.0, %v468
          %v470 = vpop.f32.mrb[0].mxu0
          %471 = vdwg.mxu0
          %472 = vst [vmem:[%s267] sm:$0xff] %v469
        $region52: #{tpu_custom_call.1} parent=31 // pred_fallthru
          _
        %s473 = sand.u32 %s127, 1
        %s474 = scalar_lea.sflag [#allocation7], %s473
        %s475 = sand.u32 %s127, 1
        %s476 = smul.addr %s475, 8
        %s477 = scalar_lea.vmem [#allocation11], %s476
        // Predicated region
        $region53: #{tpu_custom_call.1} parent=31 // pred_check
          %p478 = pneg %p137
        $region54: #{tpu_custom_call.1} parent=31 // pred_check_branch
          %480 = sbr.rel (%p478) target = $region56
        $region55: #{tpu_custom_call.1} parent=31 // pred_region
          %s482 = ssub.s32 128, 128
          %483 = vsyncadd %s474, %s482
          %s484 = smul.addr %s32, 128
          %s485 = scalar_lea.hbm %s4, %s484
          %s487 = sshll.u32 %s477, 4
          %s488 = int_to_ptr.vmem [resolvable:$true] %s487
          %490 = dma.vmem_to_hbm [thread:$0]  %s488, 128, %s485, %s474
        $region56: #{tpu_custom_call.1} parent=31 // pred_fallthru
          _
      $region32: #{tpu_custom_call.1} parent=5 // pred_fallthru
        _
      %p491 = scmp.le.s32.totalorder 2, %s23
      // Predicated region
      $region57: #{tpu_custom_call.1} parent=5 // pred_check
        %p492 = pneg %p491
      $region58: #{tpu_custom_call.1} parent=5 // pred_check_branch
        %494 = sbr.rel (%p492) target = $region60
      $region59: #{tpu_custom_call.1} parent=5 // pred_region
        %s495 = ssub.s32 %s23, 2
        // Predicated region
        $region61: #{tpu_custom_call.1} parent=59 // pred_check
          %p496 = pneg %p143
        $region62: #{tpu_custom_call.1} parent=59 // pred_check_branch
          %498 = sbr.rel (%p496) target = $region64
        $region63: #{tpu_custom_call.1} parent=59 // pred_region
          %s499 = sand.u32 %s128, 1
          %s500 = scalar_lea.sflag [#allocation7], %s499
          %s501 = sand.u32 %s128, 1
          %s502 = smul.addr %s501, 8
          %s503 = scalar_lea.vmem [#allocation11], %s502
          %504 = dma.done %s500, 128
        $region64: #{tpu_custom_call.1} parent=59 // pred_fallthru
          _
      $region60: #{tpu_custom_call.1} parent=5 // pred_fallthru
        _
    $region6: #{tpu_custom_call.1} parent=1 // loop_footer
      %s27 = sadd.s32 1, %s23
    $region7: #{tpu_custom_call.1} parent=1 // loop_footer_branch
      %22 = sbr.rel target = $region3
    $region8: #{tpu_custom_call.1} parent=1 // loop_exit
      _
    %505 = vsyncpa [#allocation6], 1
    %s506 = scalar_lea.sflag [#allocation6], 1
    %507 = vsyncpa %s506, 1
    %508 = vsyncpa [#allocation9], 1
    %s509 = scalar_lea.sflag [#allocation9], 1
    %510 = vsyncpa %s509, 1
    %511 = vsyncpa [#allocation7], 1
    %s512 = scalar_lea.sflag [#allocation7], 1
    %513 = vsyncpa %s512, 1

</llo_original>
